<compile_context>
chip_gen: v7x
topology: tpu7x:2x2x1
jax: 0.10.0
libtpu: 0.0.40
codegen_flags: <defaults>
</compile_context>

<pallas_src>
import jax
import jax.numpy as jnp
from jax.experimental import pallas as pl
from jax.experimental.pallas import tpu as pltpu


def _trigger_kernel(img_ref, trig_ref, lo_ref, hi_ref, out_ref):
    # img_ref / out_ref : (TB, TD) tile of the batch
    # trig/lo/hi        : (1, TD) tile, broadcast over the TB rows by the VPU
    x = img_ref[...] + trig_ref[...]
    x = jnp.maximum(x, lo_ref[...])
    x = jnp.minimum(x, hi_ref[...])
    out_ref[...] = x


def _round_up(x, m):
    return ((x + m - 1) // m) * m


def _vmem_budget():
    """Generation-aware (block_bytes, vmem_limit_bytes)."""
    try:
        vmem_cap = int(pltpu.get_tpu_info().vmem_capacity_bytes)
    except Exception:
        vmem_cap = 64 * 1024 * 1024  # conservative: assume v7x-sized VMEM
    if vmem_cap >= 100 * 1024 * 1024:
        # v5e / v6e: 128 MiB physical -> 8 MiB blocks, 64 MiB scoped limit.
        return 8 * 1024 * 1024, 64 * 1024 * 1024
    # v7x: 64 MiB physical -> ~6 MiB blocks keeps 2x(img)+2x(out)+bcasts
    # around ~28 MiB, comfortably under a 44 MiB scoped limit.
    return 6 * 1024 * 1024, 44 * 1024 * 1024


def _choose_tiles(B, D, itemsize, block_bytes, min_tiles=8):
    """Pick (TB, TD): sublane-full TB, lane-dense TD, >= min_tiles grid steps."""
    # Sublane packing granularity: 8 rows for 32-bit, 16 rows for 16-bit dtypes.
    sub = 8 if itemsize >= 4 else 16
    if B <= sub:
        TB = B                              # full extent -> always legal
    else:
        TB = min(64, (B // sub) * sub)      # multiple of sublane count, capped

    # Budget `block_bytes` per image block (TD multiple of 128, or full D).
    max_td = max(128, ((block_bytes // (TB * itemsize)) // 128) * 128)
    TD = D if D <= max_td else max_td

    # Ensure enough tiles so both v7x TensorCores get work and the pipeline
    # has several steps. Prefer splitting the feature axis (keeps TB full).
    n_bt = pl.cdiv(B, TB)
    if n_bt * pl.cdiv(D, TD) < min_tiles and D > 128:
        n_ft_target = -(-min_tiles // n_bt)
        td_cand = _round_up(-(-D // n_ft_target), 128)
        if td_cand < D:
            TD = max(128, td_cand)
    if n_bt * pl.cdiv(D, TD) < min_tiles and B > sub:
        n_bt_target = -(-min_tiles // pl.cdiv(D, TD))
        tb_cand = _round_up(-(-B // n_bt_target), sub)
        if sub <= tb_cand < B:
            TB = tb_cand
    return TB, TD


def trigger_forward(image, trigger, lower_bound, upper_bound, *, force_pallas=False):
    """image: (B, C, H, W); trigger/lower/upper: (1, C, H, W). Returns (B, C, H, W)."""
    B, C, H, W = image.shape
    D = C * H * W

    # Promote like PyTorch (promote-then-clamp), instead of rounding the
    # bounds down to image.dtype first.
    compute_dtype = jnp.result_type(image.dtype, trigger.dtype,
                                    lower_bound.dtype, upper_bound.dtype)
    itemsize = jnp.dtype(compute_dtype).itemsize

    # Small-problem fallback: a single-tile pallas_call is dominated by fixed
    # launch/prologue cost; XLA fuses the add+clamp into one elementwise loop.
    if not force_pallas and B * D * itemsize < (1 << 20):
        return jnp.minimum(
            jnp.maximum(image.astype(compute_dtype) + trigger.astype(compute_dtype),
                        lower_bound.astype(compute_dtype)),
            upper_bound.astype(compute_dtype))

    img2d = image.reshape(B, D).astype(compute_dtype)
    trig2d = trigger.reshape(1, D).astype(compute_dtype)
    lo2d = lower_bound.reshape(1, D).astype(compute_dtype)
    hi2d = upper_bound.reshape(1, D).astype(compute_dtype)

    block_bytes, vmem_limit = _vmem_budget()
    TB, TD = _choose_tiles(B, D, itemsize, block_bytes)

    # Feature axis OUTER, batch axis INNER: the (0, j) broadcast blocks keep a
    # constant index across consecutive inner steps, so trigger/lo/hi are each
    # DMA'd once total (their HBM traffic is 3*D, not 3*D*B/TB).
    grid = (pl.cdiv(D, TD), pl.cdiv(B, TB))

    out2d = pl.pallas_call(
        _trigger_kernel,
        out_shape=jax.ShapeDtypeStruct((B, D), compute_dtype),
        grid_spec=pltpu.PrefetchScalarGridSpec(
            num_scalar_prefetch=0,
            grid=grid,
            in_specs=[
                pl.BlockSpec((TB, TD), lambda j, i: (i, j)),  # image tile
                pl.BlockSpec((1, TD), lambda j, i: (0, j)),   # trigger (bcast)
                pl.BlockSpec((1, TD), lambda j, i: (0, j)),   # lower bound
                pl.BlockSpec((1, TD), lambda j, i: (0, j)),   # upper bound
            ],
            out_specs=pl.BlockSpec((TB, TD), lambda j, i: (i, j)),
        ),
        compiler_params=pltpu.CompilerParams(
            dimension_semantics=("parallel", "parallel"),
            vmem_limit_bytes=vmem_limit,
        ),
    )(img2d, trig2d, lo2d, hi2d)

    return out2d.reshape(B, C, H, W)


def make_trigger_params(key, H, W, dtype=jnp.float32):
    """Deterministic construction mirroring Trigger.__init__."""
    # cfg.INPUT.PIXEL_MEAN / PIXEL_STD (CLIP-like defaults), cfg.BACKDOOR.EPS = 4
    pixel_mean = jnp.array([0.48145466, 0.4578275, 0.40821073], dtype=dtype)
    pixel_std = jnp.array([0.26862954, 0.26130258, 0.27577711], dtype=dtype)
    eps = 4.0 / 255.0

    mean = pixel_mean.reshape(-1, 1, 1)   # (3,1,1)
    std = pixel_std.reshape(-1, 1, 1)     # (3,1,1)

    lower_bound = (jnp.zeros((1, 3, H, W), dtype=dtype) - mean) / std
    upper_bound = (jnp.ones((1, 3, H, W), dtype=dtype) - mean) / std

    u = jax.random.uniform(key, (1, 3, H, W), dtype=dtype)  # ~ torch.rand
    trigger = (u - 0.5) * 2.0 * eps / std
    return trigger, lower_bound, upper_bound


if __name__ == "__main__":
    key = jax.random.PRNGKey(0)
    k_trig, k_img1, k_img2 = jax.random.split(key, 3)

    mean = jnp.array([0.48145466, 0.4578275, 0.40821073]).reshape(1, -1, 1, 1)
    std = jnp.array([0.26862954, 0.26130258, 0.27577711]).reshape(1, -1, 1, 1)

    def reference(image, trigger, lo, hi):
        return jnp.minimum(jnp.maximum(image + trigger, lo), hi)

    # --- Case 1: small demo shape; force the Pallas path to exercise the kernel.
    B, C, H, W = 2, 3, 16, 16
    trigger, lower_bound, upper_bound = make_trigger_params(k_trig, H, W)
    raw = jax.random.uniform(k_img1, (B, C, H, W), dtype=jnp.float32)
    image = (raw - mean) / std

    out = trigger_forward(image, trigger, lower_bound, upper_bound, force_pallas=True)
    out = jax.block_until_ready(out)
    ref = reference(image, trigger, lower_bound, upper_bound)
    assert out.shape == (B, C, H, W)
    assert jnp.allclose(out, ref, atol=1e-6, rtol=1e-6)

    # Auto path on the tiny shape takes the XLA fallback; same numbers.
    out_auto = jax.block_until_ready(
        trigger_forward(image, trigger, lower_bound, upper_bound))
    assert jnp.allclose(out_auto, ref, atol=1e-6, rtol=1e-6)

    # --- Case 2: larger shape that takes the tiled Pallas path automatically
    #             (multi-tile grid, j-outer broadcast elision, min-tile logic).
    B2, C2, H2, W2 = 32, 3, 64, 64
    trig2, lo2, hi2 = make_trigger_params(k_trig, H2, W2)
    raw2 = jax.random.uniform(k_img2, (B2, C2, H2, W2), dtype=jnp.float32)
    image2 = (raw2 - mean) / std

    out2 = jax.block_until_ready(trigger_forward(image2, trig2, lo2, hi2))
    assert out2.shape == (B2, C2, H2, W2)
    assert jnp.allclose(out2, reference(image2, trig2, lo2, hi2), atol=1e-6, rtol=1e-6)

    print("KERNEL_OK")
</pallas_src>

<mosaic_0001>
module attributes {stable_mosaic.version = 11 : i64} {
  func.func @_trigger_kernel(%arg0: i32, %arg1: i32, %arg2: memref<2x128xf32, #tpu.memory_space<vmem>>, %arg3: memref<1x128xf32, #tpu.memory_space<vmem>>, %arg4: memref<1x128xf32, #tpu.memory_space<vmem>>, %arg5: memref<1x128xf32, #tpu.memory_space<vmem>>, %arg6: memref<2x128xf32, #tpu.memory_space<vmem>>) attributes {dimension_semantics = [#tpu.dimension_semantics<parallel>, #tpu.dimension_semantics<parallel>], iteration_bounds = array<i64: 6, 1>, scalar_prefetch = 0 : i64, scratch_operands = 0 : i64, tpu.core_type = #tpu.core_type<tc>, window_params = [{transform_indices = @transform_0, window_bounds = array<i64: 2, 128>}, {transform_indices = @transform_1, window_bounds = array<i64: 1, 128>}, {transform_indices = @transform_2, window_bounds = array<i64: 1, 128>}, {transform_indices = @transform_3, window_bounds = array<i64: 1, 128>}, {transform_indices = @transform_4, window_bounds = array<i64: 2, 128>}]} {
    %c0 = arith.constant 0 : index
    %c0_0 = arith.constant 0 : index
    %0 = vector.load %arg2[%c0, %c0_0] : memref<2x128xf32, #tpu.memory_space<vmem>>, vector<2x128xf32>
    %c0_1 = arith.constant 0 : index
    %c0_2 = arith.constant 0 : index
    %1 = vector.load %arg3[%c0_1, %c0_2] : memref<1x128xf32, #tpu.memory_space<vmem>>, vector<1x128xf32>
    %2 = vector.broadcast %1 : vector<1x128xf32> to vector<2x128xf32>
    %3 = arith.addf %0, %2 : vector<2x128xf32>
    %c0_3 = arith.constant 0 : index
    %c0_4 = arith.constant 0 : index
    %4 = vector.load %arg4[%c0_3, %c0_4] : memref<1x128xf32, #tpu.memory_space<vmem>>, vector<1x128xf32>
    %5 = vector.broadcast %4 : vector<1x128xf32> to vector<2x128xf32>
    %6 = arith.maximumf %3, %5 : vector<2x128xf32>
    %c0_5 = arith.constant 0 : index
    %c0_6 = arith.constant 0 : index
    %7 = vector.load %arg5[%c0_5, %c0_6] : memref<1x128xf32, #tpu.memory_space<vmem>>, vector<1x128xf32>
    %8 = vector.broadcast %7 : vector<1x128xf32> to vector<2x128xf32>
    %9 = arith.minimumf %6, %8 : vector<2x128xf32>
    %c0_7 = arith.constant 0 : index
    %c0_8 = arith.constant 0 : index
    %10 = vector.load %arg6[%c0_7, %c0_8] : memref<2x128xf32, #tpu.memory_space<vmem>>, vector<2x128xf32>
    tpu.vector_store %arg6[%c0_7, %c0_8], %9 {strides = array<i32>} : memref<2x128xf32, #tpu.memory_space<vmem>>, vector<2x128xf32>,
    return
  }
  func.func @transform_0(%arg0: i32, %arg1: i32) -> (i32, i32) {
    %c0_i32 = arith.constant 0 : i32
    return %arg1, %arg0 : i32, i32
  }
  func.func @transform_1(%arg0: i32, %arg1: i32) -> (i32, i32) {
    %c0_i32 = arith.constant 0 : i32
    %c0_i32_0 = arith.constant 0 : i32
    return %c0_i32, %arg0 : i32, i32
  }
  func.func @transform_2(%arg0: i32, %arg1: i32) -> (i32, i32) {
    %c0_i32 = arith.constant 0 : i32
    %c0_i32_0 = arith.constant 0 : i32
    return %c0_i32, %arg0 : i32, i32
  }
  func.func @transform_3(%arg0: i32, %arg1: i32) -> (i32, i32) {
    %c0_i32 = arith.constant 0 : i32
    %c0_i32_0 = arith.constant 0 : i32
    return %c0_i32, %arg0 : i32, i32
  }
  func.func @transform_4(%arg0: i32, %arg1: i32) -> (i32, i32) {
    %c0_i32 = arith.constant 0 : i32
    return %arg1, %arg0 : i32, i32
  }
}

</mosaic_0001>

<llo_original>
// kernel: tpu_custom_call.1
$region0: #{tpu_custom_call.1}
  #allocation0 [shape = 'u32[]', space=smem, size = 0x4, offset = 0x4, fixed_abs, tag = 'smem constant byte address 0x4 - core index']
  #allocation1 [shape = 'u32[144,128]{1,0:T(1,128)}', space=vmem, size = 0x12000, scoped, tag = 'internal scratch']
  %s0 = inlined_call_operand.hbm [shape: f32[2,768], index: 0, kind: input, shape index: {}]
  %s1 = inlined_call_operand.hbm [shape: f32[1,768], index: 1, kind: input, shape index: {}]
  %s2 = inlined_call_operand.vmem [shape: f32[1,768], index: 2, kind: input, shape index: {}]
  %s3 = inlined_call_operand.hbm [shape: f32[1,768], index: 3, kind: input, shape index: {}]
  %s4 = inlined_call_operand.hbm [shape: f32[2,768], index: 4, kind: output, shape index: {}]
  %s5 = sld [smem:[#allocation0]]
  $region61: #{tpu_custom_call.1} parent=0
    _
  %s7 = ssub.s32 1, %s5
  %s8 = scalar_select 0, %s7, %s5
  $region1: #{tpu_custom_call.1} parent=0
    #allocation2 [shape = 'u8[2048]{0}', space=vmem, size = 0x800, scoped, tag = 'input window, operand 0']
    #allocation3 [shape = 's32[2]{0}', space=sflag, size = 0x8, scoped, tag = 'scoped memory for tpu_custom_call.1']
    #allocation4 [shape = 's32[2]{0}', space=sflag, size = 0x8, scoped, tag = 'scoped memory for tpu_custom_call.1']
    #allocation5 [shape = 'u8[1024]{0}', space=vmem, size = 0x400, scoped, tag = 'input window, operand 1']
    #allocation6 [shape = 's32[2]{0}', space=sflag, size = 0x8, scoped, tag = 'scoped memory for tpu_custom_call.1']
    #allocation7 [shape = 'u8[1024]{0}', space=vmem, size = 0x400, scoped, tag = 'input window, operand 3']
    #allocation8 [shape = 'u8[2048]{0}', space=vmem, size = 0x800, scoped, tag = 'output window, operand 0']
    %9 = vsyncpa [#allocation3], 0
    %s10 = scalar_lea.sflag [#allocation3], 1
    %11 = vsyncpa %s10, 0
    %12 = vsyncpa [#allocation6], 0
    %s13 = scalar_lea.sflag [#allocation6], 1
    %14 = vsyncpa %s13, 0
    %15 = vsyncpa [#allocation4], 0
    %s16 = scalar_lea.sflag [#allocation4], 1
    %17 = vsyncpa %s16, 0
    loop: start=0, step=1, limit=8
    $region2: #{tpu_custom_call.1} parent=1 // loop_pre_header
      _
    $region3: #{tpu_custom_call.1} parent=1 // loop_header
      %s19 = sphi 0, %s23
      %p20 = scmp.ge.s32.totalorder %s19, 8
      %s26 = sphi 0, %s38
      %s27 = sphi 0, %s34
      %s28 = sphi 0, %s26
      %s29 = sphi 0, %s27
      %s30 = sphi 0, %s28
      %s31 = sphi 0, %s29
      %s43 = sphi 0, %s45
      %s46 = sphi 0, %s43
      %s47 = sphi 0, %s46
      %s63 = sphi 0, %s47
      %s69 = sphi 0, %s71
      %s72 = sphi 0, %s69
      %s73 = sphi 0, %s72
      %s89 = sphi 0, %s73
      %s95 = sphi 0, %s97
      %s98 = sphi 0, %s95
      %s99 = sphi 0, %s98
      %s115 = sphi 0, %s99
      %s121 = sphi 0, %s123
      %s124 = sphi 0, %s121
      %s125 = sphi 0, %s124
      %s141 = sphi 0, %s125
      %s149 = sphi 0, %s151
      %s152 = sphi 0, %s149
      %s153 = sphi 0, %s152
      %s169 = sphi 0, %s153
    $region4: #{tpu_custom_call.1} parent=1 // loop_header_branch
      %22 = sbr.rel (%p20) target = $region8
    $region5: #{tpu_custom_call.1} parent=1 // loop_body
      %s24 = ssub.s32 %s19, 1
      %s25 = ssub.s32 %s19, 2
      %s32 = sadd.s32 1, %s27
      %p33 = scmp.ge.s32.totalorder %s32, 1
      %s34 = scalar_select %p33, 0, %s32
      %s35 = sadd.s32 1, %s26
      %s36 = scalar_select %p33, %s35, %s26
      %p37 = scmp.ge.s32.totalorder %s36, 6
      %s38 = scalar_select %p37, 0, %s36
      %s39 = ssub.s32 %s27, %s34
      %s40 = ssub.s32 %s26, %s38
      %s41 = sor.u32 %s39, %s40
      %p42 = scmp.eq.s32.totalorder %s41, 0
      %s44 = sadd.s32 %s43, 1
      %s45 = scalar_select %p42, %s43, %s44
      %p48 = pneg %p42
      %p49 = scmp.eq.s32.totalorder %s19, 5
      %p50 = por %p48, %p49
      %p51 = scmp.ne.s32.totalorder %s43, %s46
      %p52 = scmp.eq.s32.totalorder %s19, 0
      %p53 = por %p51, %p52
      %p54 = scmp.ne.s32.totalorder %s43, %s46
      %p55 = scmp.eq.s32.totalorder %s24, 5
      %p56 = por %p54, %p55
      %p57 = scmp.ne.s32.totalorder %s46, %s47
      %p58 = scmp.eq.s32.totalorder %s24, 0
      %p59 = por %p57, %p58
      %p60 = scmp.ne.s32.totalorder %s46, %s47
      %p61 = scmp.eq.s32.totalorder %s25, 5
      %p62 = por %p60, %p61
      %p64 = scmp.ne.s32.totalorder %s47, %s63
      %p65 = scmp.eq.s32.totalorder %s25, 0
      %p66 = por %p64, %p65
      %s67 = ssub.s32 %s26, %s38
      %p68 = scmp.eq.s32.totalorder %s67, 0
      %s70 = sadd.s32 %s69, 1
      %s71 = scalar_select %p68, %s69, %s70
      %p74 = pneg %p68
      %p75 = scmp.eq.s32.totalorder %s19, 5
      %p76 = por %p74, %p75
      %p77 = scmp.ne.s32.totalorder %s69, %s72
      %p78 = scmp.eq.s32.totalorder %s19, 0
      %p79 = por %p77, %p78
      %p80 = scmp.ne.s32.totalorder %s69, %s72
      %p81 = scmp.eq.s32.totalorder %s24, 5
      %p82 = por %p80, %p81
      %p83 = scmp.ne.s32.totalorder %s72, %s73
      %p84 = scmp.eq.s32.totalorder %s24, 0
      %p85 = por %p83, %p84
      %p86 = scmp.ne.s32.totalorder %s72, %s73
      %p87 = scmp.eq.s32.totalorder %s25, 5
      %p88 = por %p86, %p87
      %p90 = scmp.ne.s32.totalorder %s73, %s89
      %p91 = scmp.eq.s32.totalorder %s25, 0
      %p92 = por %p90, %p91
      %s93 = ssub.s32 %s26, %s38
      %p94 = scmp.eq.s32.totalorder %s93, 0
      %s96 = sadd.s32 %s95, 1
      %s97 = scalar_select %p94, %s95, %s96
      %p100 = pneg %p94
      %p101 = scmp.eq.s32.totalorder %s19, 5
      %p102 = por %p100, %p101
      %p103 = scmp.ne.s32.totalorder %s95, %s98
      %p104 = scmp.eq.s32.totalorder %s19, 0
      %p105 = por %p103, %p104
      %p106 = scmp.ne.s32.totalorder %s95, %s98
      %p107 = scmp.eq.s32.totalorder %s24, 5
      %p108 = por %p106, %p107
      %p109 = scmp.ne.s32.totalorder %s98, %s99
      %p110 = scmp.eq.s32.totalorder %s24, 0
      %p111 = por %p109, %p110
      %p112 = scmp.ne.s32.totalorder %s98, %s99
      %p113 = scmp.eq.s32.totalorder %s25, 5
      %p114 = por %p112, %p113
      %p116 = scmp.ne.s32.totalorder %s99, %s115
      %p117 = scmp.eq.s32.totalorder %s25, 0
      %p118 = por %p116, %p117
      %s119 = ssub.s32 %s26, %s38
      %p120 = scmp.eq.s32.totalorder %s119, 0
      %s122 = sadd.s32 %s121, 1
      %s123 = scalar_select %p120, %s121, %s122
      %p126 = pneg %p120
      %p127 = scmp.eq.s32.totalorder %s19, 5
      %p128 = por %p126, %p127
      %p129 = scmp.ne.s32.totalorder %s121, %s124
      %p130 = scmp.eq.s32.totalorder %s19, 0
      %p131 = por %p129, %p130
      %p132 = scmp.ne.s32.totalorder %s121, %s124
      %p133 = scmp.eq.s32.totalorder %s24, 5
      %p134 = por %p132, %p133
      %p135 = scmp.ne.s32.totalorder %s124, %s125
      %p136 = scmp.eq.s32.totalorder %s24, 0
      %p137 = por %p135, %p136
      %p138 = scmp.ne.s32.totalorder %s124, %s125
      %p139 = scmp.eq.s32.totalorder %s25, 5
      %p140 = por %p138, %p139
      %p142 = scmp.ne.s32.totalorder %s125, %s141
      %p143 = scmp.eq.s32.totalorder %s25, 0
      %p144 = por %p142, %p143
      %s145 = ssub.s32 %s27, %s34
      %s146 = ssub.s32 %s26, %s38
      %s147 = sor.u32 %s145, %s146
      %p148 = scmp.eq.s32.totalorder %s147, 0
      %s150 = sadd.s32 %s149, 1
      %s151 = scalar_select %p148, %s149, %s150
      %p154 = pneg %p148
      %p155 = scmp.eq.s32.totalorder %s19, 5
      %p156 = por %p154, %p155
      %p157 = scmp.ne.s32.totalorder %s149, %s152
      %p158 = scmp.eq.s32.totalorder %s19, 0
      %p159 = por %p157, %p158
      %p160 = scmp.ne.s32.totalorder %s149, %s152
      %p161 = scmp.eq.s32.totalorder %s24, 5
      %p162 = por %p160, %p161
      %p163 = scmp.ne.s32.totalorder %s152, %s153
      %p164 = scmp.eq.s32.totalorder %s24, 0
      %p165 = por %p163, %p164
      %p166 = scmp.ne.s32.totalorder %s152, %s153
      %p167 = scmp.eq.s32.totalorder %s25, 5
      %p168 = por %p166, %p167
      %p170 = scmp.ne.s32.totalorder %s153, %s169
      %p171 = scmp.eq.s32.totalorder %s25, 0
      %p172 = por %p170, %p171
      %p173 = scmp.le.s32.totalorder 1, %s19
      %p174 = scmp.lt.s32.totalorder %s19, 7
      %p175 = pnand %p173, %p174
      %p176 = pneg %p175
      // Predicated region
      $region9: #{tpu_custom_call.1} parent=5 // pred_check
        _
      $region10: #{tpu_custom_call.1} parent=5 // pred_check_branch
        %178 = sbr.rel (%p175) target = $region12
      $region11: #{tpu_custom_call.1} parent=5 // pred_region
        %s179 = ssub.s32 %s19, 1
      $region12: #{tpu_custom_call.1} parent=5 // pred_fallthru
        _
      %p180 = scmp.lt.s32.totalorder %s19, 6
      // Predicated region
      $region13: #{tpu_custom_call.1} parent=5 // pred_check
        %p181 = pneg %p180
      $region14: #{tpu_custom_call.1} parent=5 // pred_check_branch
        %183 = sbr.rel (%p181) target = $region16
      $region15: #{tpu_custom_call.1} parent=5 // pred_region
        // Predicated region
        $region17: #{tpu_custom_call.1} parent=15 // pred_check
          %p184 = pneg %p53
        $region18: #{tpu_custom_call.1} parent=15 // pred_check_branch
          %186 = sbr.rel (%p184) target = $region20
        $region19: #{tpu_custom_call.1} parent=15 // pred_region
          %s187 = sand.u32 %s43, 1
          %s188 = scalar_lea.sflag [#allocation3], %s187
          %s189 = sand.u32 %s43, 1
          %s190 = smul.addr %s189, 2
          %s191 = scalar_lea.vmem [#allocation2], %s190
          %s193 = ssub.s32 32, 32
          %194 = vsyncadd %s188, %s193
          %s195 = smul.addr %s27, 6
          %s196 = sadd.s32 %s26, %s195
          %s197 = smul.addr %s196, 32
          %s198 = scalar_lea.hbm %s0, %s197
          %s200 = sshll.u32 %s191, 4
          %s201 = int_to_ptr.vmem [resolvable:$true] %s200
          %203 = dma.hbm_to_vmem [thread:$0]  %s198, 32, %s201, %s188
        $region20: #{tpu_custom_call.1} parent=15 // pred_fallthru
          _
        // Predicated region
        $region21: #{tpu_custom_call.1} parent=15 // pred_check
          %p204 = pneg %p79
        $region22: #{tpu_custom_call.1} parent=15 // pred_check_branch
          %206 = sbr.rel (%p204) target = $region24
        $region23: #{tpu_custom_call.1} parent=15 // pred_region
          %s207 = sand.u32 %s19, 1
          %s208 = scalar_lea.sflag [#allocation6], %s207
          %s209 = sand.u32 %s69, 1
          %s210 = scalar_lea.vmem [#allocation5], %s209
          %s212 = ssub.s32 16, 16
          %213 = vsyncadd %s208, %s212
          %s214 = smul.addr %s26, 16
          %s215 = scalar_lea.hbm %s1, %s214
          %s217 = sshll.u32 %s210, 4
          %s218 = int_to_ptr.vmem [resolvable:$true] %s217
          %220 = dma.hbm_to_vmem [thread:$0]  %s215, 16, %s218, %s208
        $region24: #{tpu_custom_call.1} parent=15 // pred_fallthru
          _
        // Predicated region
        $region25: #{tpu_custom_call.1} parent=15 // pred_check
          %p221 = pneg %p105
        $region26: #{tpu_custom_call.1} parent=15 // pred_check_branch
          %223 = sbr.rel (%p221) target = $region28
        $region27: #{tpu_custom_call.1} parent=15 // pred_region
          %p224 = scmp.lt.s32.totalorder %s26, 5
          %s225 = scalar_select %p224, %s26, 5
          %s226 = scalar_lea.vmem %s2, %s225
        $region28: #{tpu_custom_call.1} parent=15 // pred_fallthru
          _
        // Predicated region
        $region29: #{tpu_custom_call.1} parent=15 // pred_check
          %p227 = pneg %p131
        $region30: #{tpu_custom_call.1} parent=15 // pred_check_branch
          %229 = sbr.rel (%p227) target = $region32
        $region31: #{tpu_custom_call.1} parent=15 // pred_region
          %s230 = sand.u32 %s19, 1
          %s231 = scalar_lea.sflag [#allocation6], %s230
          %s232 = sand.u32 %s121, 1
          %s233 = scalar_lea.vmem [#allocation7], %s232
          %s235 = ssub.s32 16, 16
          %236 = vsyncadd %s231, %s235
          %s237 = smul.addr %s26, 16
          %s238 = scalar_lea.hbm %s3, %s237
          %s240 = sshll.u32 %s233, 4
          %s241 = int_to_ptr.vmem [resolvable:$true] %s240
          %243 = dma.hbm_to_vmem [thread:$0]  %s238, 16, %s241, %s231
        $region32: #{tpu_custom_call.1} parent=15 // pred_fallthru
          _
      $region16: #{tpu_custom_call.1} parent=5 // pred_fallthru
        _
      %p244 = scmp.le.s32.totalorder 1, %s19
      %p245 = scmp.lt.s32.totalorder %s19, 7
      %p246 = pnand %p244, %p245
      %p247 = pneg %p246
      // Predicated region
      $region33: #{tpu_custom_call.1} parent=5 // pred_check
        _
      $region34: #{tpu_custom_call.1} parent=5 // pred_check_branch
        %249 = sbr.rel (%p246) target = $region36
      $region35: #{tpu_custom_call.1} parent=5 // pred_region
        %s250 = ssub.s32 %s19, 1
        %s251 = sand.u32 %s46, 1
        %s252 = scalar_lea.sflag [#allocation3], %s251
        %s253 = sand.u32 %s46, 1
        %s254 = smul.addr %s253, 2
        %s255 = scalar_lea.vmem [#allocation2], %s254
        // Predicated region
        $region37: #{tpu_custom_call.1} parent=35 // pred_check
          %p256 = pneg %p59
        $region38: #{tpu_custom_call.1} parent=35 // pred_check_branch
          %258 = sbr.rel (%p256) target = $region40
        $region39: #{tpu_custom_call.1} parent=35 // pred_region
          %259 = dma.done %s252, 32
        $region40: #{tpu_custom_call.1} parent=35 // pred_fallthru
          _
        %s260 = sand.u32 %s24, 1
        %s261 = scalar_lea.sflag [#allocation6], %s260
        %s262 = sand.u32 %s72, 1
        %s263 = scalar_lea.vmem [#allocation5], %s262
        // Predicated region
        $region41: #{tpu_custom_call.1} parent=35 // pred_check
          %p264 = pneg %p85
        $region42: #{tpu_custom_call.1} parent=35 // pred_check_branch
          %266 = sbr.rel (%p264) target = $region44
        $region43: #{tpu_custom_call.1} parent=35 // pred_region
          %267 = dma.done %s261, 16
        $region44: #{tpu_custom_call.1} parent=35 // pred_fallthru
          _
        %s268 = sand.u32 %s24, 1
        %s269 = scalar_lea.sflag [#allocation6], %s268
        %s270 = sand.u32 %s124, 1
        %s271 = scalar_lea.vmem [#allocation7], %s270
        // Predicated region
        $region45: #{tpu_custom_call.1} parent=35 // pred_check
          %p272 = pneg %p137
        $region46: #{tpu_custom_call.1} parent=35 // pred_check_branch
          %274 = sbr.rel (%p272) target = $region48
        $region47: #{tpu_custom_call.1} parent=35 // pred_region
          %275 = dma.done %s269, 16
        $region48: #{tpu_custom_call.1} parent=35 // pred_fallthru
          _
        %s276 = sand.u32 %s46, 1
        %s277 = scalar_lea.sflag [#allocation3], %s276
        %s278 = sand.u32 %s46, 1
        %s279 = smul.addr %s278, 2
        %s280 = scalar_lea.vmem [#allocation2], %s279
        %p281 = pneg %p59
        %p282 = pneg %p56
        %s283 = sand.u32 %s24, 1
        %s284 = scalar_lea.sflag [#allocation6], %s283
        %s285 = sand.u32 %s72, 1
        %s286 = scalar_lea.vmem [#allocation5], %s285
        %p287 = pneg %p85
        %p288 = pneg %p82
        %p289 = scmp.lt.s32.totalorder %s28, 5
        %s290 = scalar_select %p289, %s28, 5
        %s291 = scalar_lea.vmem %s2, %s290
        %p292 = pneg %p111
        %p293 = pneg %p108
        %s294 = sand.u32 %s24, 1
        %s295 = scalar_lea.sflag [#allocation6], %s294
        %s296 = sand.u32 %s124, 1
        %s297 = scalar_lea.vmem [#allocation7], %s296
        %p298 = pneg %p137
        %p299 = pneg %p134
        %p300 = pneg %p165
        %p301 = pneg %p162
        %s302 = sand.u32 %s152, 1
        %s303 = scalar_lea.sflag [#allocation4], %s302
        %s304 = sand.u32 %s152, 1
        %s305 = smul.addr %s304, 2
        %s306 = scalar_lea.vmem [#allocation8], %s305
        %p307 = scmp.lt.s32.totalorder %s28, 5
        %s308 = scalar_select %p307, %s28, 5
        %s309 = scalar_lea.vmem %s2, %s308
        %v310 = vld [vmem:[%s255] sm:$0x3]
        %v311 = vld [vmem:[%s263] sm:$0x1]
        %v313 = vlaneseq
        %v314 = vshrl.u32 %v313, 7
        %v315 = vsub.s32 0, %v314
        %v316 = vrot.slane %v311, %v315
        %v318 = vadd.f32 %v310, %v316
        %v319 = vld [vmem:[%s309] sm:$0x1]
        %v321 = vlaneseq
        %v322 = vshrl.u32 %v321, 7
        %v323 = vsub.s32 0, %v322
        %v324 = vrot.slane %v319, %v323
        %v326 = vmax.f32 %v318, %v324
        %v327 = vld [vmem:[%s271] sm:$0x1]
        %v329 = vlaneseq
        %v330 = vshrl.u32 %v329, 7
        %v331 = vsub.s32 0, %v330
        %v332 = vrot.slane %v327, %v331
        %v334 = vmin.f32 %v326, %v332
        %335 = vst [vmem:[%s306] sm:$0x3] %v334
        %s336 = sand.u32 %s152, 1
        %s337 = scalar_lea.sflag [#allocation4], %s336
        %s338 = sand.u32 %s152, 1
        %s339 = smul.addr %s338, 2
        %s340 = scalar_lea.vmem [#allocation8], %s339
        // Predicated region
        $region49: #{tpu_custom_call.1} parent=35 // pred_check
          %p341 = pneg %p162
        $region50: #{tpu_custom_call.1} parent=35 // pred_check_branch
          %343 = sbr.rel (%p341) target = $region52
        $region51: #{tpu_custom_call.1} parent=35 // pred_region
          %s345 = ssub.s32 32, 32
          %346 = vsyncadd %s337, %s345
          %s347 = smul.addr %s29, 6
          %s348 = sadd.s32 %s28, %s347
          %s349 = smul.addr %s348, 32
          %s350 = scalar_lea.hbm %s4, %s349
          %s352 = sshll.u32 %s340, 4
          %s353 = int_to_ptr.vmem [resolvable:$true] %s352
          %355 = dma.vmem_to_hbm [thread:$0]  %s353, 32, %s350, %s337
        $region52: #{tpu_custom_call.1} parent=35 // pred_fallthru
          _
      $region36: #{tpu_custom_call.1} parent=5 // pred_fallthru
        _
      %p356 = scmp.le.s32.totalorder 2, %s19
      // Predicated region
      $region53: #{tpu_custom_call.1} parent=5 // pred_check
        %p357 = pneg %p356
      $region54: #{tpu_custom_call.1} parent=5 // pred_check_branch
        %359 = sbr.rel (%p357) target = $region56
      $region55: #{tpu_custom_call.1} parent=5 // pred_region
        %s360 = ssub.s32 %s19, 2
        // Predicated region
        $region57: #{tpu_custom_call.1} parent=55 // pred_check
          %p361 = pneg %p168
        $region58: #{tpu_custom_call.1} parent=55 // pred_check_branch
          %363 = sbr.rel (%p361) target = $region60
        $region59: #{tpu_custom_call.1} parent=55 // pred_region
          %s364 = sand.u32 %s153, 1
          %s365 = scalar_lea.sflag [#allocation4], %s364
          %s366 = sand.u32 %s153, 1
          %s367 = smul.addr %s366, 2
          %s368 = scalar_lea.vmem [#allocation8], %s367
          %369 = dma.done %s365, 32
        $region60: #{tpu_custom_call.1} parent=55 // pred_fallthru
          _
      $region56: #{tpu_custom_call.1} parent=5 // pred_fallthru
        _
    $region6: #{tpu_custom_call.1} parent=1 // loop_footer
      %s23 = sadd.s32 1, %s19
    $region7: #{tpu_custom_call.1} parent=1 // loop_footer_branch
      %18 = sbr.rel target = $region3
    $region8: #{tpu_custom_call.1} parent=1 // loop_exit
      _
    %370 = vsyncpa [#allocation3], 1
    %s371 = scalar_lea.sflag [#allocation3], 1
    %372 = vsyncpa %s371, 1
    %373 = vsyncpa [#allocation6], 1
    %s374 = scalar_lea.sflag [#allocation6], 1
    %375 = vsyncpa %s374, 1
    %376 = vsyncpa [#allocation4], 1
    %s377 = scalar_lea.sflag [#allocation4], 1
    %378 = vsyncpa %s377, 1

</llo_original>
